<compile_context>
chip_gen: v7x
topology: tpu7x:2x2x1
jax: 0.10.0
libtpu: 0.0.40
codegen_flags: <defaults>
</compile_context>

<pallas_src>
import functools

import jax
import jax.numpy as jnp
from jax.experimental import pallas as pl
from jax.experimental.pallas import tpu as pltpu


def _round_up(x: int, m: int) -> int:
    return ((x + m - 1) // m) * m


def _partials_kernel(y1_ref, y2_ref, mask_ref, num_ref, den_ref, *,
                     reweighting: bool, total_rows: int, tile_r: int,
                     needs_row_mask: bool):
    """Per-tile partial column sums of the rank-pair loss.

    y1_ref, y2_ref, mask_ref : (tile_r, S) f32 VMEM blocks
    num_ref, den_ref         : (1, 1, S) f32 VMEM blocks (per-column partials)
    """
    y1 = y1_ref[...]
    y2 = y2_ref[...]
    w = mask_ref[...]

    if needs_row_mask:
        # Ragged last tile: zero out-of-bounds rows BEFORE the transcendental
        # so garbage (possibly Inf/NaN) in the partial block cannot poison the
        # sums. VPU-slack work; free in the HBM-bound regime.
        row = jax.lax.broadcasted_iota(jnp.int32, w.shape, 0)
        valid = (pl.program_id(0) * tile_r + row) < total_rows
        zero = jnp.zeros_like(w)
        y1 = jnp.where(valid, y1, zero)
        y2 = jnp.where(valid, y2, zero)
        w = jnp.where(valid, w, zero)

    # m multiplies the gathered scores and is the denominator term.
    m = (w > 0.0).astype(jnp.float32) if reweighting else w

    # Matches torch: gather(y, pos)*mask - gather(y, neg)*mask.
    x = y1 * m - y2 * m
    # Numerically stable logsigmoid(x) = min(x, 0) - log1p(exp(-|x|)).
    logsig = jnp.minimum(x, 0.0) - jnp.log1p(jnp.exp(-jnp.abs(x)))

    # Sublane-axis reductions only; stores stay lane-dense (full S).
    num_ref[...] = jnp.sum(logsig * w, axis=0, keepdims=True)[None]
    den_ref[...] = jnp.sum(m, axis=0, keepdims=True)[None]


def ensemble_rvae_rank_pair_loss(y, pos_items, neg_items, mask, *,
                                 reweighting: bool = False,
                                 target_tile_bytes: int = 2 * 1024 * 1024):
    """Pallas-backed forward of ensemble_rvae_rank_pair_loss (scalar loss)."""
    assert pos_items.shape == neg_items.shape == mask.shape
    B, S = mask.shape

    # TODO(synk): torch.gather along the item (lane) axis has no clean Pallas
    # TPU equivalent for large vocab sizes; done wrapper-side with XLA.
    y1 = jnp.take_along_axis(y, pos_items.astype(jnp.int32), axis=1).astype(jnp.float32)
    y2 = jnp.take_along_axis(y, neg_items.astype(jnp.int32), axis=1).astype(jnp.float32)
    maskf = mask.astype(jnp.float32)

    # Minimum block is 8 rows x S lanes per input, double buffered, 3 inputs.
    row_bytes = S * 4
    # TODO(synk): for extremely wide S add a second (column) grid axis.
    assert 3 * 2 * 8 * row_bytes <= 48 * 1024 * 1024, "S too large for row-only tiling"

    # Tile-size policy: rows a multiple of 8, blocks <= ~target_tile_bytes,
    # and aim for >= ~8 grid steps when B allows it (pipelining + v7x TC split).
    rows8 = _round_up(B, 8)
    max_rows_by_bytes = max(8, (target_tile_bytes // row_bytes) // 8 * 8)
    rows_for_8_steps = _round_up(max(1, rows8 // 8), 8)
    tile_r = max(8, min(512, rows8, max_rows_by_bytes, rows_for_8_steps))
    num_tiles = pl.cdiv(B, tile_r)

    block_bytes = tile_r * row_bytes
    vmem_limit = int(min(64 * 1024 * 1024,
                         max(16 * 1024 * 1024,
                             3 * 2 * block_bytes + 4 * 1024 * 1024)))

    kernel = functools.partial(
        _partials_kernel, reweighting=reweighting, total_rows=B,
        tile_r=tile_r, needs_row_mask=(B % tile_r != 0))

    num_parts, den_parts = pl.pallas_call(
        kernel,
        grid=(num_tiles,),
        in_specs=[
            pl.BlockSpec((tile_r, S), lambda i: (i, 0)),
            pl.BlockSpec((tile_r, S), lambda i: (i, 0)),
            pl.BlockSpec((tile_r, S), lambda i: (i, 0)),
        ],
        out_specs=[
            pl.BlockSpec((1, 1, S), lambda i: (i, 0, 0)),
            pl.BlockSpec((1, 1, S), lambda i: (i, 0, 0)),
        ],
        out_shape=[
            jax.ShapeDtypeStruct((num_tiles, 1, S), jnp.float32),
            jax.ShapeDtypeStruct((num_tiles, 1, S), jnp.float32),
        ],
        compiler_params=pltpu.CompilerParams(
            dimension_semantics=("parallel",),
            vmem_limit_bytes=vmem_limit,
        ),
    )(y1, y2, maskf)

    # Tiny final reduction + exactly one scalar divide.
    # Note: an all-zero mask yields NaN, matching the torch reference.
    return -(jnp.sum(num_parts) / jnp.sum(den_parts))


def _ref_loss(y, pos_items, neg_items, mask, reweighting=False):
    y1 = jnp.take_along_axis(y, pos_items.astype(jnp.int32), axis=1)
    y2 = jnp.take_along_axis(y, neg_items.astype(jnp.int32), axis=1)
    weight = mask
    m = (mask > 0).astype(jnp.float32) if reweighting else mask
    return -jnp.sum(jax.nn.log_sigmoid(y1 * m - y2 * m) * weight) / jnp.sum(m)


if __name__ == "__main__":
    key = jax.random.PRNGKey(0)
    # One tile-aligned and one ragged (rows and lanes) configuration.
    for (B, N_ITEMS, S) in ((16, 512, 256), (13, 300, 200)):
        key, k_y, k_pos, k_neg, k_mval, k_mbit = jax.random.split(key, 6)
        y = jax.random.normal(k_y, (B, N_ITEMS), dtype=jnp.float32)
        pos_items = jax.random.randint(k_pos, (B, S), 0, N_ITEMS, dtype=jnp.int32)
        neg_items = jax.random.randint(k_neg, (B, S), 0, N_ITEMS, dtype=jnp.int32)
        mask_vals = jax.random.uniform(k_mval, (B, S), dtype=jnp.float32,
                                       minval=0.1, maxval=1.0)
        mask_bits = jax.random.bernoulli(k_mbit, p=0.7, shape=(B, S))
        mask = (mask_vals * mask_bits.astype(jnp.float32)).astype(jnp.float32)

        for reweighting in (False, True):   # BASELINE/OVERSAMPLING and REWEIGHTING
            out = ensemble_rvae_rank_pair_loss(y, pos_items, neg_items, mask,
                                               reweighting=reweighting)
            out = jax.block_until_ready(out)
            ref = _ref_loss(y, pos_items, neg_items, mask, reweighting=reweighting)
            assert out.shape == () and out.dtype == jnp.float32
            assert jnp.allclose(out, ref, atol=1e-5, rtol=1e-5), (
                f"mismatch (B={B}, S={S}, reweighting={reweighting}): {out} vs {ref}")

    print("KERNEL_OK")
</pallas_src>

<mosaic_0001>
module attributes {stable_mosaic.version = 11 : i64} {
  func.func @_partials_kernel(%arg0: i32, %arg1: memref<8x256xf32, #tpu.memory_space<vmem>>, %arg2: memref<8x256xf32, #tpu.memory_space<vmem>>, %arg3: memref<8x256xf32, #tpu.memory_space<vmem>>, %arg4: memref<1x1x256xf32, #tpu.memory_space<vmem>>, %arg5: memref<1x1x256xf32, #tpu.memory_space<vmem>>) attributes {dimension_semantics = [#tpu.dimension_semantics<parallel>], iteration_bounds = array<i64: 2>, scalar_prefetch = 0 : i64, scratch_operands = 0 : i64, tpu.core_type = #tpu.core_type<tc>, window_params = [{transform_indices = @transform_0, window_bounds = array<i64: 8, 256>}, {transform_indices = @transform_1, window_bounds = array<i64: 8, 256>}, {transform_indices = @transform_2, window_bounds = array<i64: 8, 256>}, {transform_indices = @transform_3, window_bounds = array<i64: 1, 1, 256>}, {transform_indices = @transform_4, window_bounds = array<i64: 1, 1, 256>}]} {
    %c0 = arith.constant 0 : index
    %c0_0 = arith.constant 0 : index
    %0 = vector.load %arg1[%c0, %c0_0] : memref<8x256xf32, #tpu.memory_space<vmem>>, vector<8x256xf32>
    %c0_1 = arith.constant 0 : index
    %c0_2 = arith.constant 0 : index
    %1 = vector.load %arg2[%c0_1, %c0_2] : memref<8x256xf32, #tpu.memory_space<vmem>>, vector<8x256xf32>
    %c0_3 = arith.constant 0 : index
    %c0_4 = arith.constant 0 : index
    %2 = vector.load %arg3[%c0_3, %c0_4] : memref<8x256xf32, #tpu.memory_space<vmem>>, vector<8x256xf32>
    %3 = arith.mulf %0, %2 : vector<8x256xf32>
    %4 = arith.mulf %1, %2 : vector<8x256xf32>
    %5 = arith.subf %3, %4 : vector<8x256xf32>
    %cst = arith.constant 0.000000e+00 : f32
    %6 = vector.broadcast %cst : f32 to vector<8x256xf32>
    %7 = arith.minimumf %5, %6 : vector<8x256xf32>
    %8 = math.absf %5 : vector<8x256xf32>
    %cst_5 = arith.constant 0.000000e+00 : f32
    %9 = vector.broadcast %cst_5 : f32 to vector<8x256xf32>
    %10 = arith.subf %9, %8 : vector<8x256xf32>
    %11 = math.exp %10 : vector<8x256xf32>
    %12 = math.log1p %11 : vector<8x256xf32>
    %13 = arith.subf %7, %12 : vector<8x256xf32>
    %14 = arith.mulf %13, %2 : vector<8x256xf32>
    %cst_6 = arith.constant dense<0.000000e+00> : vector<256xf32>
    %15 = vector.multi_reduction <add>, %14, %cst_6 [0] : vector<8x256xf32> to vector<256xf32>
    %16 = vector.shape_cast %15 : vector<256xf32> to vector<1x256xf32>
    %17 = vector.shape_cast %16 : vector<1x256xf32> to vector<1x1x256xf32>
    %c0_7 = arith.constant 0 : index
    %c0_8 = arith.constant 0 : index
    %c0_9 = arith.constant 0 : index
    %18 = vector.load %arg4[%c0_7, %c0_8, %c0_9] : memref<1x1x256xf32, #tpu.memory_space<vmem>>, vector<1x1x256xf32>
    tpu.vector_store %arg4[%c0_7, %c0_8, %c0_9], %17 {strides = array<i32>} : memref<1x1x256xf32, #tpu.memory_space<vmem>>, vector<1x1x256xf32>,
    %cst_10 = arith.constant dense<0.000000e+00> : vector<256xf32>
    %19 = vector.multi_reduction <add>, %2, %cst_10 [0] : vector<8x256xf32> to vector<256xf32>
    %20 = vector.shape_cast %19 : vector<256xf32> to vector<1x256xf32>
    %21 = vector.shape_cast %20 : vector<1x256xf32> to vector<1x1x256xf32>
    %c0_11 = arith.constant 0 : index
    %c0_12 = arith.constant 0 : index
    %c0_13 = arith.constant 0 : index
    %22 = vector.load %arg5[%c0_11, %c0_12, %c0_13] : memref<1x1x256xf32, #tpu.memory_space<vmem>>, vector<1x1x256xf32>
    tpu.vector_store %arg5[%c0_11, %c0_12, %c0_13], %21 {strides = array<i32>} : memref<1x1x256xf32, #tpu.memory_space<vmem>>, vector<1x1x256xf32>,
    return
  }
  func.func @transform_0(%arg0: i32) -> (i32, i32) {
    %c0_i32 = arith.constant 0 : i32
    %c0_i32_0 = arith.constant 0 : i32
    return %arg0, %c0_i32 : i32, i32
  }
  func.func @transform_1(%arg0: i32) -> (i32, i32) {
    %c0_i32 = arith.constant 0 : i32
    %c0_i32_0 = arith.constant 0 : i32
    return %arg0, %c0_i32 : i32, i32
  }
  func.func @transform_2(%arg0: i32) -> (i32, i32) {
    %c0_i32 = arith.constant 0 : i32
    %c0_i32_0 = arith.constant 0 : i32
    return %arg0, %c0_i32 : i32, i32
  }
  func.func @transform_3(%arg0: i32) -> (i32, i32, i32) {
    %c0_i32 = arith.constant 0 : i32
    %c0_i32_0 = arith.constant 0 : i32
    %c0_i32_1 = arith.constant 0 : i32
    return %arg0, %c0_i32, %c0_i32_0 : i32, i32, i32
  }
  func.func @transform_4(%arg0: i32) -> (i32, i32, i32) {
    %c0_i32 = arith.constant 0 : i32
    %c0_i32_0 = arith.constant 0 : i32
    %c0_i32_1 = arith.constant 0 : i32
    return %arg0, %c0_i32, %c0_i32_0 : i32, i32, i32
  }
}

</mosaic_0001>

<llo_original>
// kernel: tpu_custom_call.1
$region0: #{tpu_custom_call.1}
  #allocation0 [shape = 'u32[]', space=smem, size = 0x4, offset = 0x4, fixed_abs, tag = 'smem constant byte address 0x4 - core index']
  #allocation1 [shape = 'u32[144,128]{1,0:T(1,128)}', space=vmem, size = 0x12000, scoped, tag = 'internal scratch']
  %s0 = inlined_call_operand.hbm [shape: f32[16,256], index: 0, kind: input, shape index: {}]
  %s1 = inlined_call_operand.hbm [shape: f32[16,256], index: 1, kind: input, shape index: {}]
  %s2 = inlined_call_operand.hbm [shape: f32[16,256], index: 2, kind: input, shape index: {}]
  %s3 = inlined_call_operand.hbm [shape: f32[2,1,256], index: 3, kind: output, shape index: {0}]
  %s4 = inlined_call_operand.hbm [shape: f32[2,1,256], index: 4, kind: output, shape index: {1}]
  %5 = xla_tuple %s3, %s4
  %s6 = sld [smem:[#allocation0]]
  $region65: #{tpu_custom_call.1} parent=0
    _
  %s8 = ssub.s32 1, %s6
  %s9 = scalar_select 0, %s8, %s6
  $region1: #{tpu_custom_call.1} parent=0
    #allocation2 [shape = 'u8[16384]{0}', space=vmem, size = 0x4000, scoped, tag = 'input window, operand 0']
    #allocation3 [shape = 's32[2]{0}', space=sflag, size = 0x8, scoped, tag = 'scoped memory for tpu_custom_call.1']
    #allocation4 [shape = 's32[2]{0}', space=sflag, size = 0x8, scoped, tag = 'scoped memory for tpu_custom_call.1']
    #allocation5 [shape = 'u8[16384]{0}', space=vmem, size = 0x4000, scoped, tag = 'input window, operand 1']
    #allocation6 [shape = 's32[2]{0}', space=sflag, size = 0x8, scoped, tag = 'scoped memory for tpu_custom_call.1']
    #allocation7 [shape = 'u8[16384]{0}', space=vmem, size = 0x4000, scoped, tag = 'input window, operand 2']
    #allocation8 [shape = 'u8[2048]{0}', space=vmem, size = 0x800, scoped, tag = 'output window, operand 0']
    #allocation9 [shape = 'u8[2048]{0}', space=vmem, size = 0x800, scoped, tag = 'output window, operand 1']
    #allocation10 [shape = 's32[2]{0}', space=sflag, size = 0x8, scoped, tag = 'scoped memory for tpu_custom_call.1']
    %10 = vsyncpa [#allocation3], 0
    %s11 = scalar_lea.sflag [#allocation3], 1
    %12 = vsyncpa %s11, 0
    %13 = vsyncpa [#allocation6], 0
    %s14 = scalar_lea.sflag [#allocation6], 1
    %15 = vsyncpa %s14, 0
    %16 = vsyncpa [#allocation4], 0
    %s17 = scalar_lea.sflag [#allocation4], 1
    %18 = vsyncpa %s17, 0
    %19 = vsyncpa [#allocation10], 0
    %s20 = scalar_lea.sflag [#allocation10], 1
    %21 = vsyncpa %s20, 0
    loop: start=0, step=1, limit=4
    $region2: #{tpu_custom_call.1} parent=1 // loop_pre_header
      _
    $region3: #{tpu_custom_call.1} parent=1 // loop_header
      %s23 = sphi 0, %s27
      %p24 = scmp.ge.s32.totalorder %s23, 4
      %s33 = sphi 0, %s35
      %s36 = sphi 0, %s33
      %s37 = sphi 0, %s36
      %s53 = sphi 0, %s37
      %s59 = sphi 0, %s61
      %s62 = sphi 0, %s59
      %s63 = sphi 0, %s62
      %s79 = sphi 0, %s63
      %s85 = sphi 0, %s87
      %s88 = sphi 0, %s85
      %s89 = sphi 0, %s88
      %s105 = sphi 0, %s89
      %s111 = sphi 0, %s113
      %s114 = sphi 0, %s111
      %s115 = sphi 0, %s114
      %s131 = sphi 0, %s115
      %s137 = sphi 0, %s139
      %s140 = sphi 0, %s137
      %s141 = sphi 0, %s140
      %s157 = sphi 0, %s141
    $region4: #{tpu_custom_call.1} parent=1 // loop_header_branch
      %26 = sbr.rel (%p24) target = $region8
    $region5: #{tpu_custom_call.1} parent=1 // loop_body
      %s28 = ssub.s32 %s23, 1
      %s29 = ssub.s32 %s23, 2
      %s30 = sadd.s32 %s23, 1
      %s31 = ssub.s32 %s23, %s30
      %p32 = scmp.eq.s32.totalorder %s31, 0
      %s34 = sadd.s32 %s33, 1
      %s35 = scalar_select %p32, %s33, %s34
      %p38 = pneg %p32
      %p39 = scmp.eq.s32.totalorder %s23, 1
      %p40 = por %p38, %p39
      %p41 = scmp.ne.s32.totalorder %s33, %s36
      %p42 = scmp.eq.s32.totalorder %s23, 0
      %p43 = por %p41, %p42
      %p44 = scmp.ne.s32.totalorder %s33, %s36
      %p45 = scmp.eq.s32.totalorder %s28, 1
      %p46 = por %p44, %p45
      %p47 = scmp.ne.s32.totalorder %s36, %s37
      %p48 = scmp.eq.s32.totalorder %s28, 0
      %p49 = por %p47, %p48
      %p50 = scmp.ne.s32.totalorder %s36, %s37
      %p51 = scmp.eq.s32.totalorder %s29, 1
      %p52 = por %p50, %p51
      %p54 = scmp.ne.s32.totalorder %s37, %s53
      %p55 = scmp.eq.s32.totalorder %s29, 0
      %p56 = por %p54, %p55
      %s57 = ssub.s32 %s23, %s30
      %p58 = scmp.eq.s32.totalorder %s57, 0
      %s60 = sadd.s32 %s59, 1
      %s61 = scalar_select %p58, %s59, %s60
      %p64 = pneg %p58
      %p65 = scmp.eq.s32.totalorder %s23, 1
      %p66 = por %p64, %p65
      %p67 = scmp.ne.s32.totalorder %s59, %s62
      %p68 = scmp.eq.s32.totalorder %s23, 0
      %p69 = por %p67, %p68
      %p70 = scmp.ne.s32.totalorder %s59, %s62
      %p71 = scmp.eq.s32.totalorder %s28, 1
      %p72 = por %p70, %p71
      %p73 = scmp.ne.s32.totalorder %s62, %s63
      %p74 = scmp.eq.s32.totalorder %s28, 0
      %p75 = por %p73, %p74
      %p76 = scmp.ne.s32.totalorder %s62, %s63
      %p77 = scmp.eq.s32.totalorder %s29, 1
      %p78 = por %p76, %p77
      %p80 = scmp.ne.s32.totalorder %s63, %s79
      %p81 = scmp.eq.s32.totalorder %s29, 0
      %p82 = por %p80, %p81
      %s83 = ssub.s32 %s23, %s30
      %p84 = scmp.eq.s32.totalorder %s83, 0
      %s86 = sadd.s32 %s85, 1
      %s87 = scalar_select %p84, %s85, %s86
      %p90 = pneg %p84
      %p91 = scmp.eq.s32.totalorder %s23, 1
      %p92 = por %p90, %p91
      %p93 = scmp.ne.s32.totalorder %s85, %s88
      %p94 = scmp.eq.s32.totalorder %s23, 0
      %p95 = por %p93, %p94
      %p96 = scmp.ne.s32.totalorder %s85, %s88
      %p97 = scmp.eq.s32.totalorder %s28, 1
      %p98 = por %p96, %p97
      %p99 = scmp.ne.s32.totalorder %s88, %s89
      %p100 = scmp.eq.s32.totalorder %s28, 0
      %p101 = por %p99, %p100
      %p102 = scmp.ne.s32.totalorder %s88, %s89
      %p103 = scmp.eq.s32.totalorder %s29, 1
      %p104 = por %p102, %p103
      %p106 = scmp.ne.s32.totalorder %s89, %s105
      %p107 = scmp.eq.s32.totalorder %s29, 0
      %p108 = por %p106, %p107
      %s109 = ssub.s32 %s23, %s30
      %p110 = scmp.eq.s32.totalorder %s109, 0
      %s112 = sadd.s32 %s111, 1
      %s113 = scalar_select %p110, %s111, %s112
      %p116 = pneg %p110
      %p117 = scmp.eq.s32.totalorder %s23, 1
      %p118 = por %p116, %p117
      %p119 = scmp.ne.s32.totalorder %s111, %s114
      %p120 = scmp.eq.s32.totalorder %s23, 0
      %p121 = por %p119, %p120
      %p122 = scmp.ne.s32.totalorder %s111, %s114
      %p123 = scmp.eq.s32.totalorder %s28, 1
      %p124 = por %p122, %p123
      %p125 = scmp.ne.s32.totalorder %s114, %s115
      %p126 = scmp.eq.s32.totalorder %s28, 0
      %p127 = por %p125, %p126
      %p128 = scmp.ne.s32.totalorder %s114, %s115
      %p129 = scmp.eq.s32.totalorder %s29, 1
      %p130 = por %p128, %p129
      %p132 = scmp.ne.s32.totalorder %s115, %s131
      %p133 = scmp.eq.s32.totalorder %s29, 0
      %p134 = por %p132, %p133
      %s135 = ssub.s32 %s23, %s30
      %p136 = scmp.eq.s32.totalorder %s135, 0
      %s138 = sadd.s32 %s137, 1
      %s139 = scalar_select %p136, %s137, %s138
      %p142 = pneg %p136
      %p143 = scmp.eq.s32.totalorder %s23, 1
      %p144 = por %p142, %p143
      %p145 = scmp.ne.s32.totalorder %s137, %s140
      %p146 = scmp.eq.s32.totalorder %s23, 0
      %p147 = por %p145, %p146
      %p148 = scmp.ne.s32.totalorder %s137, %s140
      %p149 = scmp.eq.s32.totalorder %s28, 1
      %p150 = por %p148, %p149
      %p151 = scmp.ne.s32.totalorder %s140, %s141
      %p152 = scmp.eq.s32.totalorder %s28, 0
      %p153 = por %p151, %p152
      %p154 = scmp.ne.s32.totalorder %s140, %s141
      %p155 = scmp.eq.s32.totalorder %s29, 1
      %p156 = por %p154, %p155
      %p158 = scmp.ne.s32.totalorder %s141, %s157
      %p159 = scmp.eq.s32.totalorder %s29, 0
      %p160 = por %p158, %p159
      %p161 = scmp.le.s32.totalorder 1, %s23
      %p162 = scmp.lt.s32.totalorder %s23, 3
      %p163 = pnand %p161, %p162
      %p164 = pneg %p163
      // Predicated region
      $region9: #{tpu_custom_call.1} parent=5 // pred_check
        _
      $region10: #{tpu_custom_call.1} parent=5 // pred_check_branch
        %166 = sbr.rel (%p163) target = $region12
      $region11: #{tpu_custom_call.1} parent=5 // pred_region
        %s167 = ssub.s32 %s23, 1
      $region12: #{tpu_custom_call.1} parent=5 // pred_fallthru
        _
      %p168 = scmp.lt.s32.totalorder %s23, 2
      // Predicated region
      $region13: #{tpu_custom_call.1} parent=5 // pred_check
        %p169 = pneg %p168
      $region14: #{tpu_custom_call.1} parent=5 // pred_check_branch
        %171 = sbr.rel (%p169) target = $region16
      $region15: #{tpu_custom_call.1} parent=5 // pred_region
        // Predicated region
        $region17: #{tpu_custom_call.1} parent=15 // pred_check
          %p172 = pneg %p43
        $region18: #{tpu_custom_call.1} parent=15 // pred_check_branch
          %174 = sbr.rel (%p172) target = $region20
        $region19: #{tpu_custom_call.1} parent=15 // pred_region
          %s175 = sand.u32 %s33, 1
          %s176 = scalar_lea.sflag [#allocation3], %s175
          %s177 = sand.u32 %s33, 1
          %s178 = smul.addr %s177, 16
          %s179 = scalar_lea.vmem [#allocation2], %s178
          %s181 = ssub.s32 256, 256
          %182 = vsyncadd %s176, %s181
          %s183 = smul.addr %s23, 2
          %s184 = smul.addr %s183, 128
          %s185 = scalar_lea.hbm %s0, %s184
          %s187 = sshll.u32 %s179, 4
          %s188 = int_to_ptr.vmem [resolvable:$true] %s187
          %190 = dma.hbm_to_vmem [thread:$0]  %s185, 256, %s188, %s176
        $region20: #{tpu_custom_call.1} parent=15 // pred_fallthru
          _
        // Predicated region
        $region21: #{tpu_custom_call.1} parent=15 // pred_check
          %p191 = pneg %p69
        $region22: #{tpu_custom_call.1} parent=15 // pred_check_branch
          %193 = sbr.rel (%p191) target = $region24
        $region23: #{tpu_custom_call.1} parent=15 // pred_region
          %s194 = sand.u32 %s23, 1
          %s195 = scalar_lea.sflag [#allocation6], %s194
          %s196 = sand.u32 %s59, 1
          %s197 = smul.addr %s196, 16
          %s198 = scalar_lea.vmem [#allocation5], %s197
          %s200 = ssub.s32 256, 256
          %201 = vsyncadd %s195, %s200
          %s202 = smul.addr %s23, 2
          %s203 = smul.addr %s202, 128
          %s204 = scalar_lea.hbm %s1, %s203
          %s206 = sshll.u32 %s198, 4
          %s207 = int_to_ptr.vmem [resolvable:$true] %s206
          %209 = dma.hbm_to_vmem [thread:$0]  %s204, 256, %s207, %s195
        $region24: #{tpu_custom_call.1} parent=15 // pred_fallthru
          _
        // Predicated region
        $region25: #{tpu_custom_call.1} parent=15 // pred_check
          %p210 = pneg %p95
        $region26: #{tpu_custom_call.1} parent=15 // pred_check_branch
          %212 = sbr.rel (%p210) target = $region28
        $region27: #{tpu_custom_call.1} parent=15 // pred_region
          %s213 = sand.u32 %s23, 1
          %s214 = scalar_lea.sflag [#allocation6], %s213
          %s215 = sand.u32 %s85, 1
          %s216 = smul.addr %s215, 16
          %s217 = scalar_lea.vmem [#allocation7], %s216
          %s219 = ssub.s32 256, 256
          %220 = vsyncadd %s214, %s219
          %s221 = smul.addr %s23, 2
          %s222 = smul.addr %s221, 128
          %s223 = scalar_lea.hbm %s2, %s222
          %s225 = sshll.u32 %s217, 4
          %s226 = int_to_ptr.vmem [resolvable:$true] %s225
          %228 = dma.hbm_to_vmem [thread:$0]  %s223, 256, %s226, %s214
        $region28: #{tpu_custom_call.1} parent=15 // pred_fallthru
          _
      $region16: #{tpu_custom_call.1} parent=5 // pred_fallthru
        _
      %p229 = scmp.le.s32.totalorder 1, %s23
      %p230 = scmp.lt.s32.totalorder %s23, 3
      %p231 = pnand %p229, %p230
      %p232 = pneg %p231
      // Predicated region
      $region29: #{tpu_custom_call.1} parent=5 // pred_check
        _
      $region30: #{tpu_custom_call.1} parent=5 // pred_check_branch
        %234 = sbr.rel (%p231) target = $region32
      $region31: #{tpu_custom_call.1} parent=5 // pred_region
        %s235 = ssub.s32 %s23, 1
        %s236 = sand.u32 %s36, 1
        %s237 = scalar_lea.sflag [#allocation3], %s236
        %s238 = sand.u32 %s36, 1
        %s239 = smul.addr %s238, 16
        %s240 = scalar_lea.vmem [#allocation2], %s239
        // Predicated region
        $region33: #{tpu_custom_call.1} parent=31 // pred_check
          %p241 = pneg %p49
        $region34: #{tpu_custom_call.1} parent=31 // pred_check_branch
          %243 = sbr.rel (%p241) target = $region36
        $region35: #{tpu_custom_call.1} parent=31 // pred_region
          %244 = dma.done %s237, 256
        $region36: #{tpu_custom_call.1} parent=31 // pred_fallthru
          _
        %s245 = sand.u32 %s28, 1
        %s246 = scalar_lea.sflag [#allocation6], %s245
        %s247 = sand.u32 %s62, 1
        %s248 = smul.addr %s247, 16
        %s249 = scalar_lea.vmem [#allocation5], %s248
        // Predicated region
        $region37: #{tpu_custom_call.1} parent=31 // pred_check
          %p250 = pneg %p75
        $region38: #{tpu_custom_call.1} parent=31 // pred_check_branch
          %252 = sbr.rel (%p250) target = $region40
        $region39: #{tpu_custom_call.1} parent=31 // pred_region
          %253 = dma.done %s246, 256
        $region40: #{tpu_custom_call.1} parent=31 // pred_fallthru
          _
        %s254 = sand.u32 %s28, 1
        %s255 = scalar_lea.sflag [#allocation6], %s254
        %s256 = sand.u32 %s88, 1
        %s257 = smul.addr %s256, 16
        %s258 = scalar_lea.vmem [#allocation7], %s257
        // Predicated region
        $region41: #{tpu_custom_call.1} parent=31 // pred_check
          %p259 = pneg %p101
        $region42: #{tpu_custom_call.1} parent=31 // pred_check_branch
          %261 = sbr.rel (%p259) target = $region44
        $region43: #{tpu_custom_call.1} parent=31 // pred_region
          %262 = dma.done %s255, 256
        $region44: #{tpu_custom_call.1} parent=31 // pred_fallthru
          _
        %s263 = sand.u32 %s36, 1
        %s264 = scalar_lea.sflag [#allocation3], %s263
        %s265 = sand.u32 %s36, 1
        %s266 = smul.addr %s265, 16
        %s267 = scalar_lea.vmem [#allocation2], %s266
        %p268 = pneg %p49
        %p269 = pneg %p46
        %s270 = sand.u32 %s28, 1
        %s271 = scalar_lea.sflag [#allocation6], %s270
        %s272 = sand.u32 %s62, 1
        %s273 = smul.addr %s272, 16
        %s274 = scalar_lea.vmem [#allocation5], %s273
        %p275 = pneg %p75
        %p276 = pneg %p72
        %s277 = sand.u32 %s28, 1
        %s278 = scalar_lea.sflag [#allocation6], %s277
        %s279 = sand.u32 %s88, 1
        %s280 = smul.addr %s279, 16
        %s281 = scalar_lea.vmem [#allocation7], %s280
        %p282 = pneg %p101
        %p283 = pneg %p98
        %p284 = pneg %p127
        %p285 = pneg %p124
        %s286 = sand.u32 %s114, 1
        %s287 = scalar_lea.sflag [#allocation4], %s286
        %s288 = sand.u32 %s114, 1
        %s289 = smul.addr %s288, 2
        %s290 = scalar_lea.vmem [#allocation8], %s289
        %p291 = pneg %p153
        %p292 = pneg %p150
        %s293 = sand.u32 %s140, 1
        %s294 = scalar_lea.sflag [#allocation10], %s293
        %s295 = sand.u32 %s140, 1
        %s296 = smul.addr %s295, 2
        %s297 = scalar_lea.vmem [#allocation9], %s296
        %v298 = vld [vmem:[%s240] sm:$0xff]
        %v299 = vld [vmem:[%s240 + $0x8] sm:$0xff]
        %v300 = vld [vmem:[%s249] sm:$0xff]
        %v301 = vld [vmem:[%s249 + $0x8] sm:$0xff]
        %v302 = vld [vmem:[%s258] sm:$0xff]
        %v303 = vld [vmem:[%s258 + $0x8] sm:$0xff]
        %v304 = vmul.f32 %v298, %v302
        %v305 = vmul.f32 %v299, %v303
        %v306 = vmul.f32 %v300, %v302
        %v307 = vmul.f32 %v301, %v303
        %v308 = vsub.f32 %v304, %v306
        %v309 = vsub.f32 %v305, %v307
        %v310 = vmin.f32 %v308, 0.0
        %v311 = vmin.f32 %v309, 0.0
        %v312 = vand.u32 2147483647, %v308
        %v313 = vand.u32 2147483647, %v309
        %v314 = vsub.f32 0.0, %v312
        %v315 = vsub.f32 0.0, %v313
        %v316 = vmul.f32 %v314, 1.442695
        %v317 = vpow.pop %v316
        %v318 = vmul.f32 %v315, 1.442695
        %v319 = vpow.pop %v318
        %v320 = vadd.f32 %v317, 1.0
        %v321 = vlog2.pop %v320
        %v322 = vmul.f32 %v321, 0.6931472
        %v323 = vmul.f32 -0.5, %v317
        %v324 = vadd.f32 %v323, 1.0
        %v325 = vmul.f32 %v324, %v317
        %v326 = vand.u32 2147483647, %v317
        %vm327 = vcmp.lt.f32.partialorder %v326, 0.0004427343
        %v328 = vsel %vm327, %v325, %v322
        %v329 = vadd.f32 %v319, 1.0
        %v330 = vlog2.pop %v329
        %v331 = vmul.f32 %v330, 0.6931472
        %v332 = vmul.f32 -0.5, %v319
        %v333 = vadd.f32 %v332, 1.0
        %v334 = vmul.f32 %v333, %v319
        %v335 = vand.u32 2147483647, %v319
        %vm336 = vcmp.lt.f32.partialorder %v335, 0.0004427343
        %v337 = vsel %vm336, %v334, %v331
        %v338 = vsub.f32 %v310, %v328
        %v339 = vsub.f32 %v311, %v337
        %v340 = vmul.f32 %v338, %v302
        %v341 = vmul.f32 %v339, %v303
        %v342 = vrot.slane %v340, 4
        %v343 = vadd.f32 %v340, %v342
        %v344 = vrot.slane %v343, 2
        %v345 = vadd.f32 %v343, %v344
        %v346 = vrot.slane %v345, 1
        %v347 = vadd.f32 %v345, %v346
        %v348 = vrot.slane %v341, 4
        %v349 = vadd.f32 %v341, %v348
        %v350 = vrot.slane %v349, 2
        %v351 = vadd.f32 %v349, %v350
        %v352 = vrot.slane %v351, 1
        %v353 = vadd.f32 %v351, %v352
        %v356 = vcombine.low %v347, %v353
        %v358 = vunpack.c.l.s4 1966171168
        %v359 = vunpack.c.0.s8 %v358
        %v360 = vlaneseq
        %v361 = vshrl.u32 %v360, 7
        %v362 = vsub.s32 %v359, %v361
        %v363 = vrot.slane %v356, %v362
        %v365 = vunpack.c.l.s4 1966171168
        %v366 = vunpack.c.0.s8 %v365
        %v367 = vlaneseq
        %v368 = vshrl.u32 %v367, 7
        %v369 = vsub.s32 %v366, %v368
        %v370 = vrot.slane %v363, %v369
        %v372 = vlaneseq
        %vm373 = vcmp.ge.s32.totalorder %v372, 0
        %vm374 = vcmp.lt.s32.totalorder %v372, 256
        %vm375 = vmand %vm373, %vm374
        %376 = vst.msk [vmem:[%s290] sm:$0x3] %vm375, %v370
        %v377 = vrot.slane %v302, 4
        %v378 = vadd.f32 %v302, %v377
        %v379 = vrot.slane %v378, 2
        %v380 = vadd.f32 %v378, %v379
        %v381 = vrot.slane %v380, 1
        %v382 = vadd.f32 %v380, %v381
        %v383 = vrot.slane %v303, 4
        %v384 = vadd.f32 %v303, %v383
        %v385 = vrot.slane %v384, 2
        %v386 = vadd.f32 %v384, %v385
        %v387 = vrot.slane %v386, 1
        %v388 = vadd.f32 %v386, %v387
        %v391 = vcombine.low %v382, %v388
        %v393 = vunpack.c.l.s4 1966171168
        %v394 = vunpack.c.0.s8 %v393
        %v395 = vlaneseq
        %v396 = vshrl.u32 %v395, 7
        %v397 = vsub.s32 %v394, %v396
        %v398 = vrot.slane %v391, %v397
        %v400 = vunpack.c.l.s4 1966171168
        %v401 = vunpack.c.0.s8 %v400
        %v402 = vlaneseq
        %v403 = vshrl.u32 %v402, 7
        %v404 = vsub.s32 %v401, %v403
        %v405 = vrot.slane %v398, %v404
        %407 = vst.msk [vmem:[%s297] sm:$0x3] %vm375, %v405
        %s408 = sand.u32 %s114, 1
        %s409 = scalar_lea.sflag [#allocation4], %s408
        %s410 = sand.u32 %s114, 1
        %s411 = smul.addr %s410, 2
        %s412 = scalar_lea.vmem [#allocation8], %s411
        %s413 = sand.u32 %s140, 1
        %s414 = scalar_lea.sflag [#allocation10], %s413
        %s415 = sand.u32 %s140, 1
        %s416 = smul.addr %s415, 2
        %s417 = scalar_lea.vmem [#allocation9], %s416
        // Predicated region
        $region45: #{tpu_custom_call.1} parent=31 // pred_check
          %p418 = pneg %p124
        $region46: #{tpu_custom_call.1} parent=31 // pred_check_branch
          %420 = sbr.rel (%p418) target = $region48
        $region47: #{tpu_custom_call.1} parent=31 // pred_region
          %s422 = ssub.s32 32, 32
          %423 = vsyncadd %s409, %s422
          %s424 = smul.addr %s28, 2
          %s425 = smul.addr %s424, 16
          %s426 = scalar_lea.hbm %s3, %s425
          %s428 = sshll.u32 %s412, 4
          %s429 = int_to_ptr.vmem [resolvable:$true] %s428
          %431 = dma.vmem_to_hbm [thread:$0]  %s429, 32, %s426, %s409
        $region48: #{tpu_custom_call.1} parent=31 // pred_fallthru
          _
        // Predicated region
        $region49: #{tpu_custom_call.1} parent=31 // pred_check
          %p432 = pneg %p150
        $region50: #{tpu_custom_call.1} parent=31 // pred_check_branch
          %434 = sbr.rel (%p432) target = $region52
        $region51: #{tpu_custom_call.1} parent=31 // pred_region
          %s436 = ssub.s32 32, 32
          %437 = vsyncadd %s414, %s436
          %s438 = smul.addr %s28, 2
          %s439 = smul.addr %s438, 16
          %s440 = scalar_lea.hbm %s4, %s439
          %s442 = sshll.u32 %s417, 4
          %s443 = int_to_ptr.vmem [resolvable:$true] %s442
          %445 = dma.vmem_to_hbm [thread:$0]  %s443, 32, %s440, %s414
        $region52: #{tpu_custom_call.1} parent=31 // pred_fallthru
          _
      $region32: #{tpu_custom_call.1} parent=5 // pred_fallthru
        _
      %p446 = scmp.le.s32.totalorder 2, %s23
      // Predicated region
      $region53: #{tpu_custom_call.1} parent=5 // pred_check
        %p447 = pneg %p446
      $region54: #{tpu_custom_call.1} parent=5 // pred_check_branch
        %449 = sbr.rel (%p447) target = $region56
      $region55: #{tpu_custom_call.1} parent=5 // pred_region
        %s450 = ssub.s32 %s23, 2
        // Predicated region
        $region57: #{tpu_custom_call.1} parent=55 // pred_check
          %p451 = pneg %p130
        $region58: #{tpu_custom_call.1} parent=55 // pred_check_branch
          %453 = sbr.rel (%p451) target = $region60
        $region59: #{tpu_custom_call.1} parent=55 // pred_region
          %s454 = sand.u32 %s115, 1
          %s455 = scalar_lea.sflag [#allocation4], %s454
          %s456 = sand.u32 %s115, 1
          %s457 = smul.addr %s456, 2
          %s458 = scalar_lea.vmem [#allocation8], %s457
          %459 = dma.done %s455, 32
        $region60: #{tpu_custom_call.1} parent=55 // pred_fallthru
          _
        // Predicated region
        $region61: #{tpu_custom_call.1} parent=55 // pred_check
          %p460 = pneg %p156
        $region62: #{tpu_custom_call.1} parent=55 // pred_check_branch
          %462 = sbr.rel (%p460) target = $region64
        $region63: #{tpu_custom_call.1} parent=55 // pred_region
          %s463 = sand.u32 %s141, 1
          %s464 = scalar_lea.sflag [#allocation10], %s463
          %s465 = sand.u32 %s141, 1
          %s466 = smul.addr %s465, 2
          %s467 = scalar_lea.vmem [#allocation9], %s466
          %468 = dma.done %s464, 32
        $region64: #{tpu_custom_call.1} parent=55 // pred_fallthru
          _
      $region56: #{tpu_custom_call.1} parent=5 // pred_fallthru
        _
    $region6: #{tpu_custom_call.1} parent=1 // loop_footer
      %s27 = sadd.s32 1, %s23
    $region7: #{tpu_custom_call.1} parent=1 // loop_footer_branch
      %22 = sbr.rel target = $region3
    $region8: #{tpu_custom_call.1} parent=1 // loop_exit
      _
    %469 = vsyncpa [#allocation3], 1
    %s470 = scalar_lea.sflag [#allocation3], 1
    %471 = vsyncpa %s470, 1
    %472 = vsyncpa [#allocation6], 1
    %s473 = scalar_lea.sflag [#allocation6], 1
    %474 = vsyncpa %s473, 1
    %475 = vsyncpa [#allocation4], 1
    %s476 = scalar_lea.sflag [#allocation4], 1
    %477 = vsyncpa %s476, 1
    %478 = vsyncpa [#allocation10], 1
    %s479 = scalar_lea.sflag [#allocation10], 1
    %480 = vsyncpa %s479, 1

</llo_original>
